<compile_context>
chip_gen: v7x
topology: tpu7x:2x2x1
jax: 0.10.0
libtpu: 0.0.40
codegen_flags: <defaults>
</compile_context>

<pallas_src>
import jax
import jax.numpy as jnp
from jax import lax
from jax.experimental import pallas as pl
from jax.experimental.pallas import tpu as pltpu

_EPS = 1e-12  # torch.nn.functional.normalize default eps


def _soft_predictor_kernel(x_ref, w_ref, o_ref):
    """One row-tile of features vs. the (pre-normalized, pre-scaled) cluster matrix.

    x_ref: (tm, D)       feature rows (flattened batch*frames, zero-padded)
    w_ref: (K_pad, D)    10 * F.normalize(W, -1), zero-padded along K to a 128 multiple
    o_ref: (tm, K_pad)   scaled cosine-similarity logits
    """
    x = x_ref[...].astype(jnp.float32)

    # F.normalize(x, dim=-1): x / max(||x||, eps) == x * rsqrt(max(sum(x^2), eps^2))
    sumsq = jnp.sum(x * x, axis=-1, keepdims=True)
    x_norm = x * lax.rsqrt(jnp.maximum(sumsq, _EPS * _EPS))
    x_norm = x_norm.astype(w_ref.dtype)

    # Contraction on the last dim of both operands -> MXU directly, no transpose relayout.
    logits = lax.dot_general(
        x_norm, w_ref[...],
        dimension_numbers=(((1,), (1,)), ((), ())),
        preferred_element_type=jnp.float32)
    o_ref[...] = logits.astype(o_ref.dtype)


def soft_predictor(x, W, *, tm=256, out_dtype=jnp.float32):
    """Apply the SoftPredictor head.

    Args:
      x: [batch, frames, ssl_dim] SSL features (stand-in for hubert(wav)['x']).
      W: [km_classes, ssl_dim] cluster projection parameter.
      tm: row tile (multiple of 128; 256 fills the v6e/v7x 256-wide MXU too).
    Returns:
      logits_scaled: [batch, frames, km_classes] in `out_dtype`.
    """
    B, F, D = x.shape
    K, D2 = W.shape
    assert D == D2

    M = B * F
    x2d = x.reshape(M, D)

    # Pad rows so an arbitrary batch*frames count works with a large row tile.
    num_row_tiles = pl.cdiv(M, tm)
    M_pad = num_row_tiles * tm
    if M_pad != M:
        x2d = jnp.pad(x2d, ((0, M_pad - M), (0, 0)))

    # Hoist constant-weight work out of the per-tile loop: normalize W once (f32),
    # fold in the *10 scale, cast to the matmul operand dtype, pad K to a lane-dense
    # multiple of 128 (padded rows are zero -> zero logits, sliced off below).
    w32 = W.astype(jnp.float32)
    w_norm = w32 * lax.rsqrt(
        jnp.maximum(jnp.sum(w32 * w32, axis=-1, keepdims=True), _EPS * _EPS))
    w_prep = (w_norm * 10.0).astype(x.dtype)
    K_pad = pl.cdiv(K, 128) * 128
    if K_pad != K:
        w_prep = jnp.pad(w_prep, ((0, K_pad - K), (0, 0)))

    # Explicit VMEM budget: double-buffered x/out tiles + resident W, with headroom.
    in_item = jnp.dtype(x.dtype).itemsize
    out_item = jnp.dtype(out_dtype).itemsize
    est_bytes = (2 * tm * D + K_pad * D) * in_item + 2 * tm * K_pad * out_item
    vmem_limit = int(min(max(2 * est_bytes, 16 * 1024 * 1024), 64 * 1024 * 1024))

    out2d = pl.pallas_call(
        _soft_predictor_kernel,
        out_shape=jax.ShapeDtypeStruct((M_pad, K_pad), out_dtype),
        grid_spec=pltpu.PrefetchScalarGridSpec(
            num_scalar_prefetch=0,
            grid=(num_row_tiles,),
            in_specs=[
                pl.BlockSpec((tm, D), lambda i: (i, 0)),       # row tile of features
                pl.BlockSpec((K_pad, D), lambda i: (0, 0)),    # full (padded) W each step
            ],
            out_specs=pl.BlockSpec((tm, K_pad), lambda i: (i, 0)),
        ),
        compiler_params=pltpu.CompilerParams(
            dimension_semantics=("parallel",),
            vmem_limit_bytes=vmem_limit),
    )(x2d, w_prep)

    return out2d[:M, :K].reshape(B, F, K)


def _reference(x, W):
    xn = x / jnp.maximum(jnp.linalg.norm(x, axis=-1, keepdims=True), _EPS)
    wn = W / jnp.maximum(jnp.linalg.norm(W, axis=-1, keepdims=True), _EPS)
    return jnp.einsum("bfd,kd->bfk", xn, wn) * 10.0


if __name__ == "__main__":
    # Small shapes consistent with the forward:
    #   batch=2, frames=8 (HuBERT frame count for a short clip), ssl_dim=32, km_classes=16
    batch, frames, ssl_dim, km_classes = 2, 8, 32, 16

    key = jax.random.PRNGKey(0)
    kx, kw = jax.random.split(key)
    # Synthetic SSL features (what hubert(wav, features_only=True)['x'] would produce).
    x = jax.random.normal(kx, (batch, frames, ssl_dim), dtype=jnp.float32)
    # Deterministic init of self.W ~ torch.randn(km_classes, ssl_dim).
    W = jax.random.normal(kw, (km_classes, ssl_dim), dtype=jnp.float32)

    out = soft_predictor(x, W)
    out = jax.block_until_ready(out)

    ref = _reference(x, W)
    assert out.shape == (batch, frames, km_classes)
    assert jnp.allclose(out, ref, atol=1e-4, rtol=1e-4), "mismatch vs. reference"

    print("KERNEL_OK")
</pallas_src>

<mosaic_0001>
module attributes {stable_mosaic.version = 11 : i64} {
  func.func @_soft_predictor_kernel(%arg0: i32, %arg1: memref<256x32xf32, #tpu.memory_space<vmem>>, %arg2: memref<128x32xf32, #tpu.memory_space<vmem>>, %arg3: memref<256x128xf32, #tpu.memory_space<vmem>>) attributes {dimension_semantics = [#tpu.dimension_semantics<parallel>], iteration_bounds = array<i64: 1>, scalar_prefetch = 0 : i64, scratch_operands = 0 : i64, tpu.core_type = #tpu.core_type<tc>, window_params = [{transform_indices = @transform_0, window_bounds = array<i64: 256, 32>}, {pipeline_mode = #tpu.pipeline_mode<synchronous>, transform_indices = @transform_1, window_bounds = array<i64: 128, 32>}, {transform_indices = @transform_2, window_bounds = array<i64: 256, 128>}]} {
    %c0 = arith.constant 0 : index
    %c0_0 = arith.constant 0 : index
    %0 = vector.load %arg1[%c0, %c0_0] : memref<256x32xf32, #tpu.memory_space<vmem>>, vector<256x32xf32>
    %1 = arith.mulf %0, %0 : vector<256x32xf32>
    %cst = arith.constant dense<0.000000e+00> : vector<256xf32>
    %2 = vector.multi_reduction <add>, %1, %cst [1] : vector<256x32xf32> to vector<256xf32>
    %3 = vector.shape_cast %2 : vector<256xf32> to vector<256x1xf32>
    %cst_1 = arith.constant 1.000000e-24 : f32
    %4 = vector.broadcast %cst_1 : f32 to vector<256x1xf32>
    %5 = arith.maximumf %3, %4 : vector<256x1xf32>
    %6 = math.rsqrt %5 : vector<256x1xf32>
    %7 = vector.broadcast %6 : vector<256x1xf32> to vector<256x32xf32>
    %8 = arith.mulf %0, %7 : vector<256x32xf32>
    %c0_2 = arith.constant 0 : index
    %c0_3 = arith.constant 0 : index
    %9 = vector.load %arg2[%c0_2, %c0_3] : memref<128x32xf32, #tpu.memory_space<vmem>>, vector<128x32xf32>
    %cst_4 = arith.constant dense<0.000000e+00> : vector<256x128xf32>
    %10 = tpu.matmul %8, %9, %cst_4 {dimension_numbers = #tpu.dot_dimension_numbers<[1], [1], [0], [0], [0, 0, 1, 0], [], []>} : vector<256x32xf32>, vector<128x32xf32>, vector<256x128xf32> -> vector<256x128xf32>
    %c0_5 = arith.constant 0 : index
    %c0_6 = arith.constant 0 : index
    %11 = vector.load %arg3[%c0_5, %c0_6] : memref<256x128xf32, #tpu.memory_space<vmem>>, vector<256x128xf32>
    tpu.vector_store %arg3[%c0_5, %c0_6], %10 {strides = array<i32>} : memref<256x128xf32, #tpu.memory_space<vmem>>, vector<256x128xf32>,
    return
  }
  func.func @transform_0(%arg0: i32) -> (i32, i32) {
    %c0_i32 = arith.constant 0 : i32
    %c0_i32_0 = arith.constant 0 : i32
    return %arg0, %c0_i32 : i32, i32
  }
  func.func @transform_1(%arg0: i32) -> (i32, i32) {
    %c0_i32 = arith.constant 0 : i32
    %c0_i32_0 = arith.constant 0 : i32
    %c0_i32_1 = arith.constant 0 : i32
    return %c0_i32, %c0_i32_0 : i32, i32
  }
  func.func @transform_2(%arg0: i32) -> (i32, i32) {
    %c0_i32 = arith.constant 0 : i32
    %c0_i32_0 = arith.constant 0 : i32
    return %arg0, %c0_i32 : i32, i32
  }
}

</mosaic_0001>

<llo_original>
// kernel: tpu_custom_call.1
$region0: #{tpu_custom_call.1}
  #allocation0 [shape = 'u32[]', space=smem, size = 0x4, offset = 0x4, fixed_abs, tag = 'smem constant byte address 0x4 - core index']
  #allocation1 [shape = 'u32[144,128]{1,0:T(1,128)}', space=vmem, size = 0x12000, scoped, tag = 'internal scratch']
  %s0 = inlined_call_operand.vmem [shape: f32[256,32], index: 0, kind: input, shape index: {}]
  %s1 = inlined_call_operand.vmem [shape: f32[128,32], index: 1, kind: input, shape index: {}]
  %s2 = inlined_call_operand.hbm [shape: f32[256,128], index: 2, kind: output, shape index: {}]
  %s3 = sld [smem:[#allocation0]]
  $region18: #{tpu_custom_call.1} parent=0
    _
  %s5 = ssub.s32 1, %s3
  %s6 = scalar_select 0, %s5, %s3
  $region1: #{tpu_custom_call.1} parent=0
    #allocation2 [shape = 'u8[131072]{0}', space=vmem, size = 0x20000, scoped, tag = 'output window, operand 0, single buffered']
    #allocation3 [shape = 's32[1]{0}', space=sflag, size = 0x4, scoped, tag = 'scoped memory for tpu_custom_call.1']
    %7 = vsyncpa [#allocation3], 0
    // Predicated region
    $region2: #{tpu_custom_call.1} parent=1 // pred_check
      _
    $region3: #{tpu_custom_call.1} parent=1 // pred_check_branch
      %9 = sbr.rel (0) target = $region5
    $region4: #{tpu_custom_call.1} parent=1 // pred_region
      _
    $region5: #{tpu_custom_call.1} parent=1 // pred_fallthru
      _
    // Predicated region
    $region6: #{tpu_custom_call.1} parent=1 // pred_check
      _
    $region7: #{tpu_custom_call.1} parent=1 // pred_check_branch
      %11 = sbr.rel (0) target = $region9
    $region8: #{tpu_custom_call.1} parent=1 // pred_region
      _
    $region9: #{tpu_custom_call.1} parent=1 // pred_fallthru
      _
    %v12 = vld [vmem:[%s0] sm:$0xff]
    %v13 = vld [vmem:[%s0 + $0x8] sm:$0xff]
    %v14 = vld [vmem:[%s0 + $0x10] sm:$0xff]
    %v15 = vld [vmem:[%s0 + $0x18] sm:$0xff]
    %v16 = vld [vmem:[%s0 + $0x20] sm:$0xff]
    %v17 = vld [vmem:[%s0 + $0x28] sm:$0xff]
    %v18 = vld [vmem:[%s0 + $0x30] sm:$0xff]
    %v19 = vld [vmem:[%s0 + $0x38] sm:$0xff]
    %v20 = vld [vmem:[%s0 + $0x40] sm:$0xff]
    %v21 = vld [vmem:[%s0 + $0x48] sm:$0xff]
    %v22 = vld [vmem:[%s0 + $0x50] sm:$0xff]
    %v23 = vld [vmem:[%s0 + $0x58] sm:$0xff]
    %v24 = vld [vmem:[%s0 + $0x60] sm:$0xff]
    %v25 = vld [vmem:[%s0 + $0x68] sm:$0xff]
    %v26 = vld [vmem:[%s0 + $0x70] sm:$0xff]
    %v27 = vld [vmem:[%s0 + $0x78] sm:$0xff]
    %v28 = vld [vmem:[%s0 + $0x80] sm:$0xff]
    %v29 = vld [vmem:[%s0 + $0x88] sm:$0xff]
    %v30 = vld [vmem:[%s0 + $0x90] sm:$0xff]
    %v31 = vld [vmem:[%s0 + $0x98] sm:$0xff]
    %v32 = vld [vmem:[%s0 + $0xa0] sm:$0xff]
    %v33 = vld [vmem:[%s0 + $0xa8] sm:$0xff]
    %v34 = vld [vmem:[%s0 + $0xb0] sm:$0xff]
    %v35 = vld [vmem:[%s0 + $0xb8] sm:$0xff]
    %v36 = vld [vmem:[%s0 + $0xc0] sm:$0xff]
    %v37 = vld [vmem:[%s0 + $0xc8] sm:$0xff]
    %v38 = vld [vmem:[%s0 + $0xd0] sm:$0xff]
    %v39 = vld [vmem:[%s0 + $0xd8] sm:$0xff]
    %v40 = vld [vmem:[%s0 + $0xe0] sm:$0xff]
    %v41 = vld [vmem:[%s0 + $0xe8] sm:$0xff]
    %v42 = vld [vmem:[%s0 + $0xf0] sm:$0xff]
    %v43 = vld [vmem:[%s0 + $0xf8] sm:$0xff]
    %v44 = vmul.f32 %v12, %v12
    %v45 = vmul.f32 %v13, %v13
    %v46 = vmul.f32 %v14, %v14
    %v47 = vmul.f32 %v15, %v15
    %v48 = vmul.f32 %v16, %v16
    %v49 = vmul.f32 %v17, %v17
    %v50 = vmul.f32 %v18, %v18
    %v51 = vmul.f32 %v19, %v19
    %v52 = vmul.f32 %v20, %v20
    %v53 = vmul.f32 %v21, %v21
    %v54 = vmul.f32 %v22, %v22
    %v55 = vmul.f32 %v23, %v23
    %v56 = vmul.f32 %v24, %v24
    %v57 = vmul.f32 %v25, %v25
    %v58 = vmul.f32 %v26, %v26
    %v59 = vmul.f32 %v27, %v27
    %v60 = vmul.f32 %v28, %v28
    %v61 = vmul.f32 %v29, %v29
    %v62 = vmul.f32 %v30, %v30
    %v63 = vmul.f32 %v31, %v31
    %v64 = vmul.f32 %v32, %v32
    %v65 = vmul.f32 %v33, %v33
    %v66 = vmul.f32 %v34, %v34
    %v67 = vmul.f32 %v35, %v35
    %v68 = vmul.f32 %v36, %v36
    %v69 = vmul.f32 %v37, %v37
    %v70 = vmul.f32 %v38, %v38
    %v71 = vmul.f32 %v39, %v39
    %v72 = vmul.f32 %v40, %v40
    %v73 = vmul.f32 %v41, %v41
    %v74 = vmul.f32 %v42, %v42
    %v75 = vmul.f32 %v43, %v43
    %vm76 = vcmask 261120
    %v77 = vsel %vm76, %v44, 0.0
    %78 = vadd.xlane.f32.xlu0 %v77
    %v79 = vpop.xlane.xlu0 %78
    %v80 = vsel %vm76, %v45, 0.0
    %81 = vadd.xlane.f32.xlu0 %v80
    %v82 = vpop.xlane.xlu0 %81
    %v83 = vsel %vm76, %v46, 0.0
    %84 = vadd.xlane.f32.xlu0 %v83
    %v85 = vpop.xlane.xlu0 %84
    %v86 = vsel %vm76, %v47, 0.0
    %87 = vadd.xlane.f32.xlu0 %v86
    %v88 = vpop.xlane.xlu0 %87
    %v89 = vsel %vm76, %v48, 0.0
    %90 = vadd.xlane.f32.xlu0 %v89
    %v91 = vpop.xlane.xlu0 %90
    %v92 = vsel %vm76, %v49, 0.0
    %93 = vadd.xlane.f32.xlu0 %v92
    %v94 = vpop.xlane.xlu0 %93
    %v95 = vsel %vm76, %v50, 0.0
    %96 = vadd.xlane.f32.xlu0 %v95
    %v97 = vpop.xlane.xlu0 %96
    %v98 = vsel %vm76, %v51, 0.0
    %99 = vadd.xlane.f32.xlu0 %v98
    %v100 = vpop.xlane.xlu0 %99
    %v101 = vsel %vm76, %v52, 0.0
    %102 = vadd.xlane.f32.xlu0 %v101
    %v103 = vpop.xlane.xlu0 %102
    %v104 = vsel %vm76, %v53, 0.0
    %105 = vadd.xlane.f32.xlu0 %v104
    %v106 = vpop.xlane.xlu0 %105
    %v107 = vsel %vm76, %v54, 0.0
    %108 = vadd.xlane.f32.xlu0 %v107
    %v109 = vpop.xlane.xlu0 %108
    %v110 = vsel %vm76, %v55, 0.0
    %111 = vadd.xlane.f32.xlu0 %v110
    %v112 = vpop.xlane.xlu0 %111
    %v113 = vsel %vm76, %v56, 0.0
    %114 = vadd.xlane.f32.xlu0 %v113
    %v115 = vpop.xlane.xlu0 %114
    %v116 = vsel %vm76, %v57, 0.0
    %117 = vadd.xlane.f32.xlu0 %v116
    %v118 = vpop.xlane.xlu0 %117
    %v119 = vsel %vm76, %v58, 0.0
    %120 = vadd.xlane.f32.xlu0 %v119
    %v121 = vpop.xlane.xlu0 %120
    %v122 = vsel %vm76, %v59, 0.0
    %123 = vadd.xlane.f32.xlu0 %v122
    %v124 = vpop.xlane.xlu0 %123
    %v125 = vsel %vm76, %v60, 0.0
    %126 = vadd.xlane.f32.xlu0 %v125
    %v127 = vpop.xlane.xlu0 %126
    %v128 = vsel %vm76, %v61, 0.0
    %129 = vadd.xlane.f32.xlu0 %v128
    %v130 = vpop.xlane.xlu0 %129
    %v131 = vsel %vm76, %v62, 0.0
    %132 = vadd.xlane.f32.xlu0 %v131
    %v133 = vpop.xlane.xlu0 %132
    %v134 = vsel %vm76, %v63, 0.0
    %135 = vadd.xlane.f32.xlu0 %v134
    %v136 = vpop.xlane.xlu0 %135
    %v137 = vsel %vm76, %v64, 0.0
    %138 = vadd.xlane.f32.xlu0 %v137
    %v139 = vpop.xlane.xlu0 %138
    %v140 = vsel %vm76, %v65, 0.0
    %141 = vadd.xlane.f32.xlu0 %v140
    %v142 = vpop.xlane.xlu0 %141
    %v143 = vsel %vm76, %v66, 0.0
    %144 = vadd.xlane.f32.xlu0 %v143
    %v145 = vpop.xlane.xlu0 %144
    %v146 = vsel %vm76, %v67, 0.0
    %147 = vadd.xlane.f32.xlu0 %v146
    %v148 = vpop.xlane.xlu0 %147
    %v149 = vsel %vm76, %v68, 0.0
    %150 = vadd.xlane.f32.xlu0 %v149
    %v151 = vpop.xlane.xlu0 %150
    %v152 = vsel %vm76, %v69, 0.0
    %153 = vadd.xlane.f32.xlu0 %v152
    %v154 = vpop.xlane.xlu0 %153
    %v155 = vsel %vm76, %v70, 0.0
    %156 = vadd.xlane.f32.xlu0 %v155
    %v157 = vpop.xlane.xlu0 %156
    %v158 = vsel %vm76, %v71, 0.0
    %159 = vadd.xlane.f32.xlu0 %v158
    %v160 = vpop.xlane.xlu0 %159
    %v161 = vsel %vm76, %v72, 0.0
    %162 = vadd.xlane.f32.xlu0 %v161
    %v163 = vpop.xlane.xlu0 %162
    %v164 = vsel %vm76, %v73, 0.0
    %165 = vadd.xlane.f32.xlu0 %v164
    %v166 = vpop.xlane.xlu0 %165
    %v167 = vsel %vm76, %v74, 0.0
    %168 = vadd.xlane.f32.xlu0 %v167
    %v169 = vpop.xlane.xlu0 %168
    %v170 = vsel %vm76, %v75, 0.0
    %171 = vadd.xlane.f32.xlu0 %v170
    %v172 = vpop.xlane.xlu0 %171
    %v173 = vmax.f32 %v79, 1e-24
    %v174 = vmax.f32 %v82, 1e-24
    %v175 = vmax.f32 %v85, 1e-24
    %v176 = vmax.f32 %v88, 1e-24
    %v177 = vmax.f32 %v91, 1e-24
    %v178 = vmax.f32 %v94, 1e-24
    %v179 = vmax.f32 %v97, 1e-24
    %v180 = vmax.f32 %v100, 1e-24
    %v181 = vmax.f32 %v103, 1e-24
    %v182 = vmax.f32 %v106, 1e-24
    %v183 = vmax.f32 %v109, 1e-24
    %v184 = vmax.f32 %v112, 1e-24
    %v185 = vmax.f32 %v115, 1e-24
    %v186 = vmax.f32 %v118, 1e-24
    %v187 = vmax.f32 %v121, 1e-24
    %v188 = vmax.f32 %v124, 1e-24
    %v189 = vmax.f32 %v127, 1e-24
    %v190 = vmax.f32 %v130, 1e-24
    %v191 = vmax.f32 %v133, 1e-24
    %v192 = vmax.f32 %v136, 1e-24
    %v193 = vmax.f32 %v139, 1e-24
    %v194 = vmax.f32 %v142, 1e-24
    %v195 = vmax.f32 %v145, 1e-24
    %v196 = vmax.f32 %v148, 1e-24
    %v197 = vmax.f32 %v151, 1e-24
    %v198 = vmax.f32 %v154, 1e-24
    %v199 = vmax.f32 %v157, 1e-24
    %v200 = vmax.f32 %v160, 1e-24
    %v201 = vmax.f32 %v163, 1e-24
    %v202 = vmax.f32 %v166, 1e-24
    %v203 = vmax.f32 %v169, 1e-24
    %v204 = vmax.f32 %v172, 1e-24
    %v205 = vrsqrt.pop %v173
    %v206 = vrsqrt.pop %v174
    %v207 = vrsqrt.pop %v175
    %v208 = vrsqrt.pop %v176
    %v209 = vrsqrt.pop %v177
    %v210 = vrsqrt.pop %v178
    %v211 = vrsqrt.pop %v179
    %v212 = vrsqrt.pop %v180
    %v213 = vrsqrt.pop %v181
    %v214 = vrsqrt.pop %v182
    %v215 = vrsqrt.pop %v183
    %v216 = vrsqrt.pop %v184
    %v217 = vrsqrt.pop %v185
    %v218 = vrsqrt.pop %v186
    %v219 = vrsqrt.pop %v187
    %v220 = vrsqrt.pop %v188
    %v221 = vrsqrt.pop %v189
    %v222 = vrsqrt.pop %v190
    %v223 = vrsqrt.pop %v191
    %v224 = vrsqrt.pop %v192
    %v225 = vrsqrt.pop %v193
    %v226 = vrsqrt.pop %v194
    %v227 = vrsqrt.pop %v195
    %v228 = vrsqrt.pop %v196
    %v229 = vrsqrt.pop %v197
    %v230 = vrsqrt.pop %v198
    %v231 = vrsqrt.pop %v199
    %v232 = vrsqrt.pop %v200
    %v233 = vrsqrt.pop %v201
    %v234 = vrsqrt.pop %v202
    %v235 = vrsqrt.pop %v203
    %v236 = vrsqrt.pop %v204
    %v237 = vmul.f32 %v12, %v205
    %v238 = vmul.f32 %v13, %v206
    %v239 = vmul.f32 %v14, %v207
    %v240 = vmul.f32 %v15, %v208
    %v241 = vmul.f32 %v16, %v209
    %v242 = vmul.f32 %v17, %v210
    %v243 = vmul.f32 %v18, %v211
    %v244 = vmul.f32 %v19, %v212
    %v245 = vmul.f32 %v20, %v213
    %v246 = vmul.f32 %v21, %v214
    %v247 = vmul.f32 %v22, %v215
    %v248 = vmul.f32 %v23, %v216
    %v249 = vmul.f32 %v24, %v217
    %v250 = vmul.f32 %v25, %v218
    %v251 = vmul.f32 %v26, %v219
    %v252 = vmul.f32 %v27, %v220
    %v253 = vmul.f32 %v28, %v221
    %v254 = vmul.f32 %v29, %v222
    %v255 = vmul.f32 %v30, %v223
    %v256 = vmul.f32 %v31, %v224
    %v257 = vmul.f32 %v32, %v225
    %v258 = vmul.f32 %v33, %v226
    %v259 = vmul.f32 %v34, %v227
    %v260 = vmul.f32 %v35, %v228
    %v261 = vmul.f32 %v36, %v229
    %v262 = vmul.f32 %v37, %v230
    %v263 = vmul.f32 %v38, %v231
    %v264 = vmul.f32 %v39, %v232
    %v265 = vmul.f32 %v40, %v233
    %v266 = vmul.f32 %v41, %v234
    %v267 = vmul.f32 %v42, %v235
    %v268 = vmul.f32 %v43, %v236
    %v269 = vld [vmem:[%s1] sm:$0xff]
    %v270 = vld [vmem:[%s1 + $0x8] sm:$0xff]
    %v271 = vld [vmem:[%s1 + $0x10] sm:$0xff]
    %v272 = vld [vmem:[%s1 + $0x18] sm:$0xff]
    %v273 = vld [vmem:[%s1 + $0x20] sm:$0xff]
    %v274 = vld [vmem:[%s1 + $0x28] sm:$0xff]
    %v275 = vld [vmem:[%s1 + $0x30] sm:$0xff]
    %v276 = vld [vmem:[%s1 + $0x38] sm:$0xff]
    %v277 = vld [vmem:[%s1 + $0x40] sm:$0xff]
    %v278 = vld [vmem:[%s1 + $0x48] sm:$0xff]
    %v279 = vld [vmem:[%s1 + $0x50] sm:$0xff]
    %v280 = vld [vmem:[%s1 + $0x58] sm:$0xff]
    %v281 = vld [vmem:[%s1 + $0x60] sm:$0xff]
    %v282 = vld [vmem:[%s1 + $0x68] sm:$0xff]
    %v283 = vld [vmem:[%s1 + $0x70] sm:$0xff]
    %v284 = vld [vmem:[%s1 + $0x78] sm:$0xff]
    %v286 = vsel %vm76, %v237, 0
    %v289 = vsel %vm76, %v238, 0
    %v292 = vsel %vm76, %v239, 0
    %v295 = vsel %vm76, %v240, 0
    %v298 = vsel %vm76, %v241, 0
    %v301 = vsel %vm76, %v242, 0
    %v304 = vsel %vm76, %v243, 0
    %v307 = vsel %vm76, %v244, 0
    %v310 = vsel %vm76, %v245, 0
    %v313 = vsel %vm76, %v246, 0
    %v316 = vsel %vm76, %v247, 0
    %v319 = vsel %vm76, %v248, 0
    %v322 = vsel %vm76, %v249, 0
    %v325 = vsel %vm76, %v250, 0
    %v328 = vsel %vm76, %v251, 0
    %v331 = vsel %vm76, %v252, 0
    %v334 = vsel %vm76, %v253, 0
    %v337 = vsel %vm76, %v254, 0
    %v340 = vsel %vm76, %v255, 0
    %v343 = vsel %vm76, %v256, 0
    %v346 = vsel %vm76, %v257, 0
    %v349 = vsel %vm76, %v258, 0
    %v352 = vsel %vm76, %v259, 0
    %v355 = vsel %vm76, %v260, 0
    %v358 = vsel %vm76, %v261, 0
    %v361 = vsel %vm76, %v262, 0
    %v364 = vsel %vm76, %v263, 0
    %v367 = vsel %vm76, %v264, 0
    %v370 = vsel %vm76, %v265, 0
    %v373 = vsel %vm76, %v266, 0
    %v376 = vsel %vm76, %v267, 0
    %v379 = vsel %vm76, %v268, 0
    %v382 = vsel %vm76, %v269, 0
    %v385 = vsel %vm76, %v270, 0
    %v388 = vsel %vm76, %v271, 0
    %v391 = vsel %vm76, %v272, 0
    %v394 = vsel %vm76, %v273, 0
    %v397 = vsel %vm76, %v274, 0
    %v400 = vsel %vm76, %v275, 0
    %v403 = vsel %vm76, %v276, 0
    %v406 = vsel %vm76, %v277, 0
    %v409 = vsel %vm76, %v278, 0
    %v412 = vsel %vm76, %v279, 0
    %v415 = vsel %vm76, %v280, 0
    %v418 = vsel %vm76, %v281, 0
    %v421 = vsel %vm76, %v282, 0
    %v424 = vsel %vm76, %v283, 0
    %v427 = vsel %vm76, %v284, 0
    %429 = vmatprep.subr.mxu0 0.0
    %430 = vmatpush1.xpose.msra.mxu0 %v382
    %431 = vmatprep.subr.mxu0 0.0
    %432 = vmatpush1.xpose.msra.mxu0 %v385
    %433 = vmatprep.subr.mxu0 0.0
    %434 = vmatpush1.xpose.msra.mxu0 %v388
    %435 = vmatprep.subr.mxu0 0.0
    %436 = vmatpush1.xpose.msra.mxu0 %v391
    %437 = vmatprep.subr.mxu0 0.0
    %438 = vmatpush1.xpose.msra.mxu0 %v394
    %439 = vmatprep.subr.mxu0 0.0
    %440 = vmatpush1.xpose.msra.mxu0 %v397
    %441 = vmatprep.subr.mxu0 0.0
    %442 = vmatpush1.xpose.msra.mxu0 %v400
    %443 = vmatprep.subr.mxu0 0.0
    %444 = vmatpush1.xpose.msra.mxu0 %v403
    %445 = vmatprep.subr.mxu0 0.0
    %446 = vmatpush1.xpose.msra.mxu0 %v406
    %447 = vmatprep.subr.mxu0 0.0
    %448 = vmatpush1.xpose.msra.mxu0 %v409
    %449 = vmatprep.subr.mxu0 0.0
    %450 = vmatpush1.xpose.msra.mxu0 %v412
    %451 = vmatprep.subr.mxu0 0.0
    %452 = vmatpush1.xpose.msra.mxu0 %v415
    %453 = vmatprep.subr.mxu0 0.0
    %454 = vmatpush1.xpose.msra.mxu0 %v418
    %455 = vmatprep.subr.mxu0 0.0
    %456 = vmatpush1.xpose.msra.mxu0 %v421
    %457 = vmatprep.subr.mxu0 0.0
    %458 = vmatpush1.xpose.msra.mxu0 %v424
    %459 = vmatprep.subr.mxu0 0.0
    %460 = vmatpush1.xpose.msra.mxu0 %v427
    %461 = vmatprep.subr.mxu0 0.0
    %462 = vmatpush1.xpose.msra.mxu0 0.0
    %463 = vmatprep.subr.mxu0 0.0
    %464 = vmatpush1.xpose.msra.mxu0 0.0
    %465 = vmatprep.subr.mxu0 0.0
    %466 = vmatpush1.xpose.msra.mxu0 0.0
    %467 = vmatprep.subr.mxu0 0.0
    %468 = vmatpush1.xpose.msra.mxu0 0.0
    %469 = vmatprep.subr.mxu0 0.0
    %470 = vmatpush1.xpose.msra.mxu0 0.0
    %471 = vmatprep.subr.mxu0 0.0
    %472 = vmatpush1.xpose.msra.mxu0 0.0
    %473 = vmatprep.subr.mxu0 0.0
    %474 = vmatpush1.xpose.msra.mxu0 0.0
    %475 = vmatprep.subr.mxu0 0.0
    %476 = vmatpush1.xpose.msra.mxu0 0.0
    %477 = vmatprep.subr.mxu0 0.0
    %478 = vmatpush1.xpose.msra.mxu0 0.0
    %479 = vmatprep.subr.mxu0 0.0
    %480 = vmatpush1.xpose.msra.mxu0 0.0
    %481 = vmatprep.subr.mxu0 0.0
    %482 = vmatpush1.xpose.msra.mxu0 0.0
    %483 = vmatprep.subr.mxu0 0.0
    %484 = vmatpush1.xpose.msra.mxu0 0.0
    %485 = vmatprep.subr.mxu0 0.0
    %486 = vmatpush1.xpose.msra.mxu0 0.0
    %487 = vmatprep.subr.mxu0 0.0
    %488 = vmatpush1.xpose.msra.mxu0 0.0
    %489 = vmatprep.subr.mxu0 0.0
    %490 = vmatpush1.xpose.msra.mxu0 0.0
    %491 = vmatprep.subr.mxu0 0.0
    %492 = vmatpush1.xpose.msra.mxu0 0.0
    %493 = vmatprep.mubr.f32.mxu0 0.0
    %494 = vmatmul.mubr.f32.gmra.mrb[0].mxu0 %v286
    %v495 = vpop.f32.mrb[0].mxu0
    %v496 = vadd.f32 0.0, %v495
    %v497 = vpop.f32.mrb[0].mxu0
    %498 = vmatprep.mubr.f32.mxu0 0.0
    %499 = vmatmul.mubr.f32.gmra.mrb[0].mxu0 %v289
    %v500 = vpop.f32.mrb[0].mxu0
    %v501 = vadd.f32 0.0, %v500
    %v502 = vpop.f32.mrb[0].mxu0
    %503 = vmatprep.mubr.f32.mxu0 0.0
    %504 = vmatmul.mubr.f32.gmra.mrb[0].mxu0 %v292
    %v505 = vpop.f32.mrb[0].mxu0
    %v506 = vadd.f32 0.0, %v505
    %v507 = vpop.f32.mrb[0].mxu0
    %508 = vmatprep.mubr.f32.mxu0 0.0
    %509 = vmatmul.mubr.f32.gmra.mrb[0].mxu0 %v295
    %v510 = vpop.f32.mrb[0].mxu0
    %v511 = vadd.f32 0.0, %v510
    %v512 = vpop.f32.mrb[0].mxu0
    %513 = vmatprep.mubr.f32.mxu0 0.0
    %514 = vmatmul.mubr.f32.gmra.mrb[0].mxu0 %v298
    %v515 = vpop.f32.mrb[0].mxu0
    %v516 = vadd.f32 0.0, %v515
    %v517 = vpop.f32.mrb[0].mxu0
    %518 = vmatprep.mubr.f32.mxu0 0.0
    %519 = vmatmul.mubr.f32.gmra.mrb[0].mxu0 %v301
    %v520 = vpop.f32.mrb[0].mxu0
    %v521 = vadd.f32 0.0, %v520
    %v522 = vpop.f32.mrb[0].mxu0
    %523 = vmatprep.mubr.f32.mxu0 0.0
    %524 = vmatmul.mubr.f32.gmra.mrb[0].mxu0 %v304
    %v525 = vpop.f32.mrb[0].mxu0
    %v526 = vadd.f32 0.0, %v525
    %v527 = vpop.f32.mrb[0].mxu0
    %528 = vmatprep.mubr.f32.mxu0 0.0
    %529 = vmatmul.mubr.f32.gmra.mrb[0].mxu0 %v307
    %v530 = vpop.f32.mrb[0].mxu0
    %v531 = vadd.f32 0.0, %v530
    %v532 = vpop.f32.mrb[0].mxu0
    %533 = vmatprep.mubr.f32.mxu0 0.0
    %534 = vmatmul.mubr.f32.gmra.mrb[0].mxu0 %v310
    %v535 = vpop.f32.mrb[0].mxu0
    %v536 = vadd.f32 0.0, %v535
    %v537 = vpop.f32.mrb[0].mxu0
    %538 = vmatprep.mubr.f32.mxu0 0.0
    %539 = vmatmul.mubr.f32.gmra.mrb[0].mxu0 %v313
    %v540 = vpop.f32.mrb[0].mxu0
    %v541 = vadd.f32 0.0, %v540
    %v542 = vpop.f32.mrb[0].mxu0
    %543 = vmatprep.mubr.f32.mxu0 0.0
    %544 = vmatmul.mubr.f32.gmra.mrb[0].mxu0 %v316
    %v545 = vpop.f32.mrb[0].mxu0
    %v546 = vadd.f32 0.0, %v545
    %v547 = vpop.f32.mrb[0].mxu0
    %548 = vmatprep.mubr.f32.mxu0 0.0
    %549 = vmatmul.mubr.f32.gmra.mrb[0].mxu0 %v319
    %v550 = vpop.f32.mrb[0].mxu0
    %v551 = vadd.f32 0.0, %v550
    %v552 = vpop.f32.mrb[0].mxu0
    %553 = vmatprep.mubr.f32.mxu0 0.0
    %554 = vmatmul.mubr.f32.gmra.mrb[0].mxu0 %v322
    %v555 = vpop.f32.mrb[0].mxu0
    %v556 = vadd.f32 0.0, %v555
    %v557 = vpop.f32.mrb[0].mxu0
    %558 = vmatprep.mubr.f32.mxu0 0.0
    %559 = vmatmul.mubr.f32.gmra.mrb[0].mxu0 %v325
    %v560 = vpop.f32.mrb[0].mxu0
    %v561 = vadd.f32 0.0, %v560
    %v562 = vpop.f32.mrb[0].mxu0
    %563 = vmatprep.mubr.f32.mxu0 0.0
    %564 = vmatmul.mubr.f32.gmra.mrb[0].mxu0 %v328
    %v565 = vpop.f32.mrb[0].mxu0
    %v566 = vadd.f32 0.0, %v565
    %v567 = vpop.f32.mrb[0].mxu0
    %568 = vmatprep.mubr.f32.mxu0 0.0
    %569 = vmatmul.mubr.f32.gmra.mrb[0].mxu0 %v331
    %v570 = vpop.f32.mrb[0].mxu0
    %v571 = vadd.f32 0.0, %v570
    %v572 = vpop.f32.mrb[0].mxu0
    %573 = vmatprep.mubr.f32.mxu0 0.0
    %574 = vmatmul.mubr.f32.gmra.mrb[0].mxu0 %v334
    %v575 = vpop.f32.mrb[0].mxu0
    %v576 = vadd.f32 0.0, %v575
    %v577 = vpop.f32.mrb[0].mxu0
    %578 = vmatprep.mubr.f32.mxu0 0.0
    %579 = vmatmul.mubr.f32.gmra.mrb[0].mxu0 %v337
    %v580 = vpop.f32.mrb[0].mxu0
    %v581 = vadd.f32 0.0, %v580
    %v582 = vpop.f32.mrb[0].mxu0
    %583 = vmatprep.mubr.f32.mxu0 0.0
    %584 = vmatmul.mubr.f32.gmra.mrb[0].mxu0 %v340
    %v585 = vpop.f32.mrb[0].mxu0
    %v586 = vadd.f32 0.0, %v585
    %v587 = vpop.f32.mrb[0].mxu0
    %588 = vmatprep.mubr.f32.mxu0 0.0
    %589 = vmatmul.mubr.f32.gmra.mrb[0].mxu0 %v343
    %v590 = vpop.f32.mrb[0].mxu0
    %v591 = vadd.f32 0.0, %v590
    %v592 = vpop.f32.mrb[0].mxu0
    %593 = vmatprep.mubr.f32.mxu0 0.0
    %594 = vmatmul.mubr.f32.gmra.mrb[0].mxu0 %v346
    %v595 = vpop.f32.mrb[0].mxu0
    %v596 = vadd.f32 0.0, %v595
    %v597 = vpop.f32.mrb[0].mxu0
    %598 = vmatprep.mubr.f32.mxu0 0.0
    %599 = vmatmul.mubr.f32.gmra.mrb[0].mxu0 %v349
    %v600 = vpop.f32.mrb[0].mxu0
    %v601 = vadd.f32 0.0, %v600
    %v602 = vpop.f32.mrb[0].mxu0
    %603 = vmatprep.mubr.f32.mxu0 0.0
    %604 = vmatmul.mubr.f32.gmra.mrb[0].mxu0 %v352
    %v605 = vpop.f32.mrb[0].mxu0
    %v606 = vadd.f32 0.0, %v605
    %v607 = vpop.f32.mrb[0].mxu0
    %608 = vmatprep.mubr.f32.mxu0 0.0
    %609 = vmatmul.mubr.f32.gmra.mrb[0].mxu0 %v355
    %v610 = vpop.f32.mrb[0].mxu0
    %v611 = vadd.f32 0.0, %v610
    %v612 = vpop.f32.mrb[0].mxu0
    %613 = vmatprep.mubr.f32.mxu0 0.0
    %614 = vmatmul.mubr.f32.gmra.mrb[0].mxu0 %v358
    %v615 = vpop.f32.mrb[0].mxu0
    %v616 = vadd.f32 0.0, %v615
    %v617 = vpop.f32.mrb[0].mxu0
    %618 = vmatprep.mubr.f32.mxu0 0.0
    %619 = vmatmul.mubr.f32.gmra.mrb[0].mxu0 %v361
    %v620 = vpop.f32.mrb[0].mxu0
    %v621 = vadd.f32 0.0, %v620
    %v622 = vpop.f32.mrb[0].mxu0
    %623 = vmatprep.mubr.f32.mxu0 0.0
    %624 = vmatmul.mubr.f32.gmra.mrb[0].mxu0 %v364
    %v625 = vpop.f32.mrb[0].mxu0
    %v626 = vadd.f32 0.0, %v625
    %v627 = vpop.f32.mrb[0].mxu0
    %628 = vmatprep.mubr.f32.mxu0 0.0
    %629 = vmatmul.mubr.f32.gmra.mrb[0].mxu0 %v367
    %v630 = vpop.f32.mrb[0].mxu0
    %v631 = vadd.f32 0.0, %v630
    %v632 = vpop.f32.mrb[0].mxu0
    %633 = vmatprep.mubr.f32.mxu0 0.0
    %634 = vmatmul.mubr.f32.gmra.mrb[0].mxu0 %v370
    %v635 = vpop.f32.mrb[0].mxu0
    %v636 = vadd.f32 0.0, %v635
    %v637 = vpop.f32.mrb[0].mxu0
    %638 = vmatprep.mubr.f32.mxu0 0.0
    %639 = vmatmul.mubr.f32.gmra.mrb[0].mxu0 %v373
    %v640 = vpop.f32.mrb[0].mxu0
    %v641 = vadd.f32 0.0, %v640
    %v642 = vpop.f32.mrb[0].mxu0
    %643 = vmatprep.mubr.f32.mxu0 0.0
    %644 = vmatmul.mubr.f32.gmra.mrb[0].mxu0 %v376
    %v645 = vpop.f32.mrb[0].mxu0
    %v646 = vadd.f32 0.0, %v645
    %v647 = vpop.f32.mrb[0].mxu0
    %648 = vmatprep.mubr.f32.mxu0 0.0
    %649 = vmatmul.mubr.f32.gmra.mrb[0].mxu0 %v379
    %v650 = vpop.f32.mrb[0].mxu0
    %v651 = vadd.f32 0.0, %v650
    %v652 = vpop.f32.mrb[0].mxu0
    %653 = vdwg.mxu0
    %654 = vst [vmem:[#allocation2] sm:$0xff] %v496
    %655 = vst [vmem:[#allocation2 + $0x8] sm:$0xff] %v501
    %656 = vst [vmem:[#allocation2 + $0x10] sm:$0xff] %v506
    %657 = vst [vmem:[#allocation2 + $0x18] sm:$0xff] %v511
    %658 = vst [vmem:[#allocation2 + $0x20] sm:$0xff] %v516
    %659 = vst [vmem:[#allocation2 + $0x28] sm:$0xff] %v521
    %660 = vst [vmem:[#allocation2 + $0x30] sm:$0xff] %v526
    %661 = vst [vmem:[#allocation2 + $0x38] sm:$0xff] %v531
    %662 = vst [vmem:[#allocation2 + $0x40] sm:$0xff] %v536
    %663 = vst [vmem:[#allocation2 + $0x48] sm:$0xff] %v541
    %664 = vst [vmem:[#allocation2 + $0x50] sm:$0xff] %v546
    %665 = vst [vmem:[#allocation2 + $0x58] sm:$0xff] %v551
    %666 = vst [vmem:[#allocation2 + $0x60] sm:$0xff] %v556
    %667 = vst [vmem:[#allocation2 + $0x68] sm:$0xff] %v561
    %668 = vst [vmem:[#allocation2 + $0x70] sm:$0xff] %v566
    %669 = vst [vmem:[#allocation2 + $0x78] sm:$0xff] %v571
    %670 = vst [vmem:[#allocation2 + $0x80] sm:$0xff] %v576
    %671 = vst [vmem:[#allocation2 + $0x88] sm:$0xff] %v581
    %672 = vst [vmem:[#allocation2 + $0x90] sm:$0xff] %v586
    %673 = vst [vmem:[#allocation2 + $0x98] sm:$0xff] %v591
    %674 = vst [vmem:[#allocation2 + $0xa0] sm:$0xff] %v596
    %675 = vst [vmem:[#allocation2 + $0xa8] sm:$0xff] %v601
    %676 = vst [vmem:[#allocation2 + $0xb0] sm:$0xff] %v606
    %677 = vst [vmem:[#allocation2 + $0xb8] sm:$0xff] %v611
    %678 = vst [vmem:[#allocation2 + $0xc0] sm:$0xff] %v616
    %679 = vst [vmem:[#allocation2 + $0xc8] sm:$0xff] %v621
    %680 = vst [vmem:[#allocation2 + $0xd0] sm:$0xff] %v626
    %681 = vst [vmem:[#allocation2 + $0xd8] sm:$0xff] %v631
    %682 = vst [vmem:[#allocation2 + $0xe0] sm:$0xff] %v636
    %683 = vst [vmem:[#allocation2 + $0xe8] sm:$0xff] %v641
    %684 = vst [vmem:[#allocation2 + $0xf0] sm:$0xff] %v646
    %685 = vst [vmem:[#allocation2 + $0xf8] sm:$0xff] %v651
    // Predicated region
    $region10: #{tpu_custom_call.1} parent=1 // pred_check
      _
    $region11: #{tpu_custom_call.1} parent=1 // pred_check_branch
      %687 = sbr.rel (0) target = $region13
    $region12: #{tpu_custom_call.1} parent=1 // pred_region
      %s689 = ssub.s32 4096, 4096
      %690 = vsyncadd [#allocation3], %s689
      %s691 = sshll.u32 [#allocation2], 4
      %s692 = int_to_ptr.vmem [resolvable:$true] %s691
      %697 = dma.vmem_to_hbm [thread:$0]  %s692, 4096, %s2, [#allocation3], 128, 128, 8
    $region13: #{tpu_custom_call.1} parent=1 // pred_fallthru
      _
    // Predicated region
    $region14: #{tpu_custom_call.1} parent=1 // pred_check
      _
    $region15: #{tpu_custom_call.1} parent=1 // pred_check_branch
      %699 = sbr.rel (0) target = $region17
    $region16: #{tpu_custom_call.1} parent=1 // pred_region
      %700 = dma.done [#allocation3], 4096
    $region17: #{tpu_custom_call.1} parent=1 // pred_fallthru
      _
    %701 = vsyncpa [#allocation3], 1

</llo_original>
